<compile_context>
chip_gen: v7x
topology: tpu7x:2x2x1
jax: 0.10.0
libtpu: 0.0.40
codegen_flags: <defaults>
</compile_context>

<pallas_src>
import numpy as np
import jax
import jax.numpy as jnp
from jax.experimental import pallas as pl
from jax.experimental.pallas import tpu as pltpu


def _round_up(x: int, m: int) -> int:
    return ((x + m - 1) // m) * m


def _dft_basis3d(n_fft: int, hop_length: int, window: jnp.ndarray,
                 dtype) -> jnp.ndarray:
    """Windowed real-DFT basis for bins 1..n_fft//2 (DC dropped), reorganized
    for the hop decomposition: basis3d[q, c, r] = basisT[c, q*hop + r]."""
    f = n_fft // 2
    q_blocks = -(-n_fft // hop_length)              # ceil(n_fft / hop)
    n_pad = q_blocks * hop_length
    k = jnp.arange(1, f + 1, dtype=jnp.float32)[:, None]     # (F, 1)
    n = jnp.arange(n_fft, dtype=jnp.float32)[None, :]        # (1, n_fft)
    ang = 2.0 * jnp.pi * k * n / n_fft
    w = window.astype(jnp.float32)[None, :]
    real = jnp.cos(ang) * w                                   # (F, n_fft)
    imag = -jnp.sin(ang) * w                                  # (F, n_fft)
    basis_t = jnp.concatenate([real, imag], axis=0)           # (2F, n_fft)
    basis_t = jnp.pad(basis_t, ((0, 0), (0, n_pad - n_fft)))  # zero-pad window
    basis3d = basis_t.reshape(2 * f, q_blocks, hop_length)
    basis3d = jnp.transpose(basis3d, (1, 0, 2))               # (Q, 2F, hop)
    return basis3d.astype(dtype)


def _make_stft_kernel(q_blocks: int):
    """Kernel: out (2F, Tt) = sum_q basis[q] (2F, hop) @ shifted-steps (hop, Tt).

    cur_ref / nxt_ref are the current and next time-tile of the hop-strided
    waveform; shifting by q frames is a static lane slice + concat."""

    def kernel(basis_ref, cur_ref, nxt_ref, out_ref):
        cur = cur_ref[0]                                      # (hop, Tt)
        # q = 0 term (no shift).  f32 accumulate on the MXU.
        out_ref[0] = jnp.dot(basis_ref[0], cur,
                             preferred_element_type=jnp.float32)
        if q_blocks > 1:
            nxt = nxt_ref[0]                                  # (hop, Tt)
            for q in range(1, q_blocks):                      # static unroll
                w = jnp.concatenate([cur[:, q:], nxt[:, :q]], axis=1)
                out_ref[0] += jnp.dot(basis_ref[q], w,
                                      preferred_element_type=jnp.float32)

    return kernel


def spectrogram_forward(waveform: jnp.ndarray, *, n_fft: int, hop_length: int,
                        window: jnp.ndarray, time_block: int = 256,
                        compute_dtype=jnp.float32) -> jnp.ndarray:
    """Pallas implementation of _Spectrogram.forward (center=True, reflect pad,
    onesided, normalized=False)."""
    assert n_fft % 2 == 0, "Only even number is supported as n_fft."
    assert hop_length > 0

    shape = waveform.shape
    assert len(shape) in (2, 3), \
        "(batch_size, length) or (batch_size, in_channels, length) is supported."
    if len(shape) == 3:
        assert shape[1] == 1, "Only monoral is supported now."
    length = shape[-1]
    pad = n_fft // 2
    assert length > pad, "waveform too short for reflect padding of n_fft // 2."
    assert window.shape == (n_fft,), "window must have length n_fft."

    flat = waveform.reshape(-1, length).astype(jnp.float32)   # (B, L)
    b = flat.shape[0]
    f = n_fft // 2
    two_f = 2 * f

    # torch.stft(center=True): reflect-pad n_fft//2 on both sides.
    padded = jnp.pad(flat, ((0, 0), (pad, pad)), mode="reflect")
    padded_len = length + 2 * pad
    assert padded_len >= n_fft, "padded waveform shorter than n_fft."
    n_frames = 1 + (padded_len - n_fft) // hop_length

    q_blocks = -(-n_fft // hop_length)            # window split into Q hops
    qh = q_blocks * hop_length

    # Time tile = lane axis of the output: multiple of 128, >= q_blocks.
    t_tile = min(_round_up(time_block, 128), _round_up(n_frames, 128))
    t_tile = max(t_tile, _round_up(q_blocks, 128))
    t_pad = _round_up(n_frames, t_tile)
    num_tiles = t_pad // t_tile

    # Hop-strided "step" layout: steps[b, r, s] = padded[b, s*hop + r], with
    # one extra (zero) time tile so the kernel's "next tile" input always
    # exists.  This replaces the old (B*T, n_fft) overlapping-frame gather.
    s_total = (num_tiles + 1) * t_tile
    ext_len = s_total * hop_length
    padded_ext = jnp.pad(padded, ((0, 0), (0, ext_len - padded_len)))
    steps = padded_ext.reshape(b, s_total, hop_length)
    steps = jnp.transpose(steps, (0, 2, 1)).astype(compute_dtype)  # (B,hop,S)

    basis3d = _dft_basis3d(n_fft, hop_length, window, compute_dtype)  # (Q,2F,hop)

    kernel = _make_stft_kernel(q_blocks)

    # Explicit VMEM budget (double-buffered operands) — matters on v7x (64 MiB
    # physical / 32 MiB default scoped) and v5e (16 MiB default scoped).
    bpe = jnp.dtype(compute_dtype).itemsize
    basis_bytes = q_blocks * two_f * hop_length * bpe
    in_tile_bytes = hop_length * t_tile * bpe
    out_tile_bytes = two_f * t_tile * 4
    vmem_needed = 2 * (basis_bytes + 2 * in_tile_bytes + out_tile_bytes) + (2 << 20)
    vmem_limit = int(min(max(vmem_needed, 16 << 20), 64 << 20))

    cost = pl.CostEstimate(
        flops=int(2 * b * t_pad * two_f * qh),
        transcendentals=0,
        bytes_accessed=int(2 * steps.size * bpe + basis_bytes
                           + b * two_f * t_pad * 4),
    )

    out_padded = pl.pallas_call(
        kernel,
        out_shape=jax.ShapeDtypeStruct((b, two_f, t_pad), jnp.float32),
        grid=(b, num_tiles),
        in_specs=[
            # DFT basis: resident across the whole grid (constant index map).
            pl.BlockSpec((q_blocks, two_f, hop_length), lambda bi, ti: (0, 0, 0)),
            # Current time tile of the hop-strided waveform.
            pl.BlockSpec((1, hop_length, t_tile), lambda bi, ti: (bi, 0, ti)),
            # Next time tile (for the frame overlap); always valid thanks to
            # the extra zero tile appended above.
            pl.BlockSpec((1, hop_length, t_tile), lambda bi, ti: (bi, 0, ti + 1)),
        ],
        out_specs=pl.BlockSpec((1, two_f, t_tile), lambda bi, ti: (bi, 0, ti)),
        compiler_params=pltpu.CompilerParams(
            dimension_semantics=("parallel", "parallel"),
            vmem_limit_bytes=vmem_limit),
        cost_estimate=cost,
    )(basis3d, steps, steps)

    out = out_padded[:, :, :n_frames]            # (B, 2F, T)
    out = out.reshape(b, 2, f, n_frames)         # free split -> (B, 2, F, T)
    return out


if __name__ == "__main__":
    key = jax.random.PRNGKey(0)

    batch, length = 2, 64
    n_fft, hop_length = 16, 4
    # Deterministic "parameter": Hann window (what torch.hann_window gives).
    window = 0.5 * (1.0 - jnp.cos(
        2.0 * jnp.pi * jnp.arange(n_fft, dtype=jnp.float32) / n_fft))

    waveform = jax.random.normal(key, (batch, 1, length), dtype=jnp.float32)

    out = spectrogram_forward(
        waveform, n_fft=n_fft, hop_length=hop_length, window=window)
    out = jax.block_until_ready(out)

    # Reference check: rfft-based STFT with the same framing/padding, DC dropped.
    flat = waveform.reshape(-1, length)
    padded = jnp.pad(flat, ((0, 0), (n_fft // 2, n_fft // 2)), mode="reflect")
    n_frames = 1 + (padded.shape[1] - n_fft) // hop_length
    idx = (jnp.arange(n_frames)[:, None] * hop_length
           + jnp.arange(n_fft)[None, :])
    frames = padded[:, idx] * window[None, None, :]
    spec = jnp.fft.rfft(frames, axis=-1)[..., 1:]               # (B, T, F)
    ref = jnp.stack([jnp.real(spec), jnp.imag(spec)], axis=1)   # (B, 2, T, F)
    ref = jnp.transpose(ref, (0, 1, 3, 2))                      # (B, 2, F, T)

    assert out.shape == (batch, 2, n_fft // 2, n_frames), out.shape
    np.testing.assert_allclose(np.asarray(out), np.asarray(ref),
                               rtol=1e-4, atol=1e-4)
    print("KERNEL_OK")
</pallas_src>

<mosaic_0001>
module attributes {stable_mosaic.version = 11 : i64} {
  func.func @kernel(%arg0: i32, %arg1: i32, %arg2: memref<4x16x4xf32, #tpu.memory_space<vmem>>, %arg3: memref<1x4x128xf32, #tpu.memory_space<vmem>>, %arg4: memref<1x4x128xf32, #tpu.memory_space<vmem>>, %arg5: memref<1x16x128xf32, #tpu.memory_space<vmem>>) attributes {dimension_semantics = [#tpu.dimension_semantics<parallel>, #tpu.dimension_semantics<parallel>], iteration_bounds = array<i64: 2, 1>, scalar_prefetch = 0 : i64, scratch_operands = 0 : i64, tpu.core_type = #tpu.core_type<tc>, window_params = [{pipeline_mode = #tpu.pipeline_mode<synchronous>, transform_indices = @transform_0, window_bounds = array<i64: 4, 16, 4>}, {transform_indices = @transform_1, window_bounds = array<i64: 1, 4, 128>}, {transform_indices = @transform_2, window_bounds = array<i64: 1, 4, 128>}, {transform_indices = @transform_3, window_bounds = array<i64: 1, 16, 128>}]} {
    %c0 = arith.constant 0 : index
    %c0_0 = arith.constant 0 : index
    %c0_1 = arith.constant 0 : index
    %0 = vector.load %arg3[%c0, %c0_0, %c0_1] : memref<1x4x128xf32, #tpu.memory_space<vmem>>, vector<1x4x128xf32>
    %1 = vector.shape_cast %0 : vector<1x4x128xf32> to vector<4x128xf32>
    %c0_2 = arith.constant 0 : index
    %c0_3 = arith.constant 0 : index
    %c0_4 = arith.constant 0 : index
    %2 = vector.load %arg2[%c0_2, %c0_3, %c0_4] : memref<4x16x4xf32, #tpu.memory_space<vmem>>, vector<1x16x4xf32>
    %3 = vector.shape_cast %2 : vector<1x16x4xf32> to vector<16x4xf32>
    %cst = arith.constant dense<0.000000e+00> : vector<16x128xf32>
    %4 = tpu.matmul %3, %1, %cst {dimension_numbers = #tpu.dot_dimension_numbers<[1], [0], [0], [1], [0, 0, 1, 1], [], []>} : vector<16x4xf32>, vector<4x128xf32>, vector<16x128xf32> -> vector<16x128xf32>
    %c0_5 = arith.constant 0 : index
    %c0_6 = arith.constant 0 : index
    %c0_7 = arith.constant 0 : index
    %5 = vector.load %arg5[%c0_5, %c0_6, %c0_7] : memref<1x16x128xf32, #tpu.memory_space<vmem>>, vector<1x16x128xf32>
    %6 = vector.shape_cast %5 : vector<1x16x128xf32> to vector<16x128xf32>
    %7 = vector.shape_cast %4 : vector<16x128xf32> to vector<1x16x128xf32>
    tpu.vector_store %arg5[%c0_5, %c0_6, %c0_7], %7 {strides = array<i32>} : memref<1x16x128xf32, #tpu.memory_space<vmem>>, vector<1x16x128xf32>,
    %c0_8 = arith.constant 0 : index
    %c0_9 = arith.constant 0 : index
    %c0_10 = arith.constant 0 : index
    %8 = vector.load %arg4[%c0_8, %c0_9, %c0_10] : memref<1x4x128xf32, #tpu.memory_space<vmem>>, vector<1x4x128xf32>
    %9 = vector.shape_cast %8 : vector<1x4x128xf32> to vector<4x128xf32>
    %10 = vector.extract_strided_slice %1 {offsets = [0, 1], sizes = [4, 127], strides = [1, 1]} : vector<4x128xf32> to vector<4x127xf32>
    %11 = vector.extract_strided_slice %9 {offsets = [0, 0], sizes = [4, 1], strides = [1, 1]} : vector<4x128xf32> to vector<4x1xf32>
    %12 = tpu.concatenate %10, %11 in 1 : vector<4x127xf32>, vector<4x1xf32> -> vector<4x128xf32>
    %c0_11 = arith.constant 0 : index
    %c0_12 = arith.constant 0 : index
    %c0_13 = arith.constant 0 : index
    %13 = vector.load %arg5[%c0_11, %c0_12, %c0_13] : memref<1x16x128xf32, #tpu.memory_space<vmem>>, vector<1x16x128xf32>
    %14 = vector.shape_cast %13 : vector<1x16x128xf32> to vector<16x128xf32>
    %c1 = arith.constant 1 : index
    %c0_14 = arith.constant 0 : index
    %c0_15 = arith.constant 0 : index
    %15 = vector.load %arg2[%c1, %c0_14, %c0_15] : memref<4x16x4xf32, #tpu.memory_space<vmem>>, vector<1x16x4xf32>
    %16 = vector.shape_cast %15 : vector<1x16x4xf32> to vector<16x4xf32>
    %cst_16 = arith.constant dense<0.000000e+00> : vector<16x128xf32>
    %17 = tpu.matmul %16, %12, %cst_16 {dimension_numbers = #tpu.dot_dimension_numbers<[1], [0], [0], [1], [0, 0, 1, 1], [], []>} : vector<16x4xf32>, vector<4x128xf32>, vector<16x128xf32> -> vector<16x128xf32>
    %18 = arith.addf %14, %17 : vector<16x128xf32>
    %c0_17 = arith.constant 0 : index
    %c0_18 = arith.constant 0 : index
    %c0_19 = arith.constant 0 : index
    %19 = vector.load %arg5[%c0_17, %c0_18, %c0_19] : memref<1x16x128xf32, #tpu.memory_space<vmem>>, vector<1x16x128xf32>
    %20 = vector.shape_cast %19 : vector<1x16x128xf32> to vector<16x128xf32>
    %21 = vector.shape_cast %18 : vector<16x128xf32> to vector<1x16x128xf32>
    tpu.vector_store %arg5[%c0_17, %c0_18, %c0_19], %21 {strides = array<i32>} : memref<1x16x128xf32, #tpu.memory_space<vmem>>, vector<1x16x128xf32>,
    %22 = vector.extract_strided_slice %1 {offsets = [0, 2], sizes = [4, 126], strides = [1, 1]} : vector<4x128xf32> to vector<4x126xf32>
    %23 = vector.extract_strided_slice %9 {offsets = [0, 0], sizes = [4, 2], strides = [1, 1]} : vector<4x128xf32> to vector<4x2xf32>
    %24 = tpu.concatenate %22, %23 in 1 : vector<4x126xf32>, vector<4x2xf32> -> vector<4x128xf32>
    %c0_20 = arith.constant 0 : index
    %c0_21 = arith.constant 0 : index
    %c0_22 = arith.constant 0 : index
    %25 = vector.load %arg5[%c0_20, %c0_21, %c0_22] : memref<1x16x128xf32, #tpu.memory_space<vmem>>, vector<1x16x128xf32>
    %26 = vector.shape_cast %25 : vector<1x16x128xf32> to vector<16x128xf32>
    %c2 = arith.constant 2 : index
    %c0_23 = arith.constant 0 : index
    %c0_24 = arith.constant 0 : index
    %27 = vector.load %arg2[%c2, %c0_23, %c0_24] : memref<4x16x4xf32, #tpu.memory_space<vmem>>, vector<1x16x4xf32>
    %28 = vector.shape_cast %27 : vector<1x16x4xf32> to vector<16x4xf32>
    %cst_25 = arith.constant dense<0.000000e+00> : vector<16x128xf32>
    %29 = tpu.matmul %28, %24, %cst_25 {dimension_numbers = #tpu.dot_dimension_numbers<[1], [0], [0], [1], [0, 0, 1, 1], [], []>} : vector<16x4xf32>, vector<4x128xf32>, vector<16x128xf32> -> vector<16x128xf32>
    %30 = arith.addf %26, %29 : vector<16x128xf32>
    %c0_26 = arith.constant 0 : index
    %c0_27 = arith.constant 0 : index
    %c0_28 = arith.constant 0 : index
    %31 = vector.load %arg5[%c0_26, %c0_27, %c0_28] : memref<1x16x128xf32, #tpu.memory_space<vmem>>, vector<1x16x128xf32>
    %32 = vector.shape_cast %31 : vector<1x16x128xf32> to vector<16x128xf32>
    %33 = vector.shape_cast %30 : vector<16x128xf32> to vector<1x16x128xf32>
    tpu.vector_store %arg5[%c0_26, %c0_27, %c0_28], %33 {strides = array<i32>} : memref<1x16x128xf32, #tpu.memory_space<vmem>>, vector<1x16x128xf32>,
    %34 = vector.extract_strided_slice %1 {offsets = [0, 3], sizes = [4, 125], strides = [1, 1]} : vector<4x128xf32> to vector<4x125xf32>
    %35 = vector.extract_strided_slice %9 {offsets = [0, 0], sizes = [4, 3], strides = [1, 1]} : vector<4x128xf32> to vector<4x3xf32>
    %36 = tpu.concatenate %34, %35 in 1 : vector<4x125xf32>, vector<4x3xf32> -> vector<4x128xf32>
    %c0_29 = arith.constant 0 : index
    %c0_30 = arith.constant 0 : index
    %c0_31 = arith.constant 0 : index
    %37 = vector.load %arg5[%c0_29, %c0_30, %c0_31] : memref<1x16x128xf32, #tpu.memory_space<vmem>>, vector<1x16x128xf32>
    %38 = vector.shape_cast %37 : vector<1x16x128xf32> to vector<16x128xf32>
    %c3 = arith.constant 3 : index
    %c0_32 = arith.constant 0 : index
    %c0_33 = arith.constant 0 : index
    %39 = vector.load %arg2[%c3, %c0_32, %c0_33] : memref<4x16x4xf32, #tpu.memory_space<vmem>>, vector<1x16x4xf32>
    %40 = vector.shape_cast %39 : vector<1x16x4xf32> to vector<16x4xf32>
    %cst_34 = arith.constant dense<0.000000e+00> : vector<16x128xf32>
    %41 = tpu.matmul %40, %36, %cst_34 {dimension_numbers = #tpu.dot_dimension_numbers<[1], [0], [0], [1], [0, 0, 1, 1], [], []>} : vector<16x4xf32>, vector<4x128xf32>, vector<16x128xf32> -> vector<16x128xf32>
    %42 = arith.addf %38, %41 : vector<16x128xf32>
    %c0_35 = arith.constant 0 : index
    %c0_36 = arith.constant 0 : index
    %c0_37 = arith.constant 0 : index
    %43 = vector.load %arg5[%c0_35, %c0_36, %c0_37] : memref<1x16x128xf32, #tpu.memory_space<vmem>>, vector<1x16x128xf32>
    %44 = vector.shape_cast %43 : vector<1x16x128xf32> to vector<16x128xf32>
    %45 = vector.shape_cast %42 : vector<16x128xf32> to vector<1x16x128xf32>
    tpu.vector_store %arg5[%c0_35, %c0_36, %c0_37], %45 {strides = array<i32>} : memref<1x16x128xf32, #tpu.memory_space<vmem>>, vector<1x16x128xf32>,
    return
  }
  func.func @transform_0(%arg0: i32, %arg1: i32) -> (i32, i32, i32) {
    %c0_i32 = arith.constant 0 : i32
    %c0_i32_0 = arith.constant 0 : i32
    %c0_i32_1 = arith.constant 0 : i32
    %c0_i32_2 = arith.constant 0 : i32
    return %c0_i32, %c0_i32_0, %c0_i32_1 : i32, i32, i32
  }
  func.func @transform_1(%arg0: i32, %arg1: i32) -> (i32, i32, i32) {
    %c0_i32 = arith.constant 0 : i32
    %c0_i32_0 = arith.constant 0 : i32
    return %arg0, %c0_i32, %arg1 : i32, i32, i32
  }
  func.func @transform_2(%arg0: i32, %arg1: i32) -> (i32, i32, i32) {
    %c1_i32 = arith.constant 1 : i32
    %0 = arith.addi %arg1, %c1_i32 : i32
    %c0_i32 = arith.constant 0 : i32
    %c0_i32_0 = arith.constant 0 : i32
    return %arg0, %c0_i32, %0 : i32, i32, i32
  }
  func.func @transform_3(%arg0: i32, %arg1: i32) -> (i32, i32, i32) {
    %c0_i32 = arith.constant 0 : i32
    %c0_i32_0 = arith.constant 0 : i32
    return %arg0, %c0_i32, %arg1 : i32, i32, i32
  }
}

</mosaic_0001>

<llo_original>
// kernel: tpu_custom_call.1
$region0: #{tpu_custom_call.1}
  #allocation0 [shape = 'u32[]', space=smem, size = 0x4, offset = 0x4, fixed_abs, tag = 'smem constant byte address 0x4 - core index']
  #allocation1 [shape = 'u32[144,128]{1,0:T(1,128)}', space=vmem, size = 0x12000, scoped, tag = 'internal scratch']
  %s0 = inlined_call_operand.vmem [shape: f32[4,16,4], index: 0, kind: input, shape index: {}]
  %s1 = inlined_call_operand.vmem [shape: f32[2,4,256], index: 1, kind: input, shape index: {}]
  %s2 = inlined_call_operand.vmem [shape: f32[2,4,256], index: 2, kind: input, shape index: {}]
  %s3 = inlined_call_operand.hbm [shape: f32[2,16,128], index: 3, kind: output, shape index: {}]
  %s4 = sld [smem:[#allocation0]]
  $region45: #{tpu_custom_call.1} parent=0
    _
  %s6 = ssub.s32 1, %s4
  %s7 = scalar_select 0, %s6, %s4
  $region1: #{tpu_custom_call.1} parent=0
    #allocation2 [shape = 'u8[16384]{0}', space=vmem, size = 0x4000, scoped, tag = 'output window, operand 0']
    #allocation3 [shape = 's32[2]{0}', space=sflag, size = 0x8, scoped, tag = 'scoped memory for tpu_custom_call.1']
    %8 = vsyncpa [#allocation3], 0
    %s9 = scalar_lea.sflag [#allocation3], 1
    %10 = vsyncpa %s9, 0
    loop: start=0, step=1, limit=4
    $region2: #{tpu_custom_call.1} parent=1 // loop_pre_header
      _
    $region3: #{tpu_custom_call.1} parent=1 // loop_header
      %s12 = sphi 0, %s16
      %p13 = scmp.ge.s32.totalorder %s12, 4
      %s19 = sphi 0, %s31
      %s20 = sphi 0, %s27
      %s21 = sphi 0, %s19
      %s22 = sphi 0, %s20
      %s23 = sphi 0, %s21
      %s24 = sphi 0, %s22
      %s32 = sphi 0, %s32
      %s34 = sphi 0, %s32
      %s35 = sphi 0, %s34
      %s49 = sphi 0, %s35
      %s57 = sphi 0, %s59
      %s60 = sphi 0, %s57
      %s61 = sphi 0, %s60
      %s77 = sphi 0, %s61
      %s87 = sphi 0, %s89
      %s90 = sphi 0, %s87
      %s91 = sphi 0, %s90
      %s107 = sphi 0, %s91
      %s115 = sphi 0, %s117
      %s118 = sphi 0, %s115
      %s119 = sphi 0, %s118
      %s135 = sphi 0, %s119
    $region4: #{tpu_custom_call.1} parent=1 // loop_header_branch
      %15 = sbr.rel (%p13) target = $region8
    $region5: #{tpu_custom_call.1} parent=1 // loop_body
      %s17 = ssub.s32 %s12, 1
      %s18 = ssub.s32 %s12, 2
      %s25 = sadd.s32 1, %s20
      %p26 = scmp.ge.s32.totalorder %s25, 1
      %s27 = scalar_select %p26, 0, %s25
      %s28 = sadd.s32 1, %s19
      %s29 = scalar_select %p26, %s28, %s19
      %p30 = scmp.ge.s32.totalorder %s29, 2
      %s31 = scalar_select %p30, 0, %s29
      %s33 = sadd.s32 %s32, 1
      %p36 = scmp.eq.s32.totalorder %s12, 1
      %p37 = scmp.ne.s32.totalorder %s32, %s34
      %p38 = scmp.eq.s32.totalorder %s12, 0
      %p39 = por %p37, %p38
      %p40 = scmp.ne.s32.totalorder %s32, %s34
      %p41 = scmp.eq.s32.totalorder %s17, 1
      %p42 = por %p40, %p41
      %p43 = scmp.ne.s32.totalorder %s34, %s35
      %p44 = scmp.eq.s32.totalorder %s17, 0
      %p45 = por %p43, %p44
      %p46 = scmp.ne.s32.totalorder %s34, %s35
      %p47 = scmp.eq.s32.totalorder %s18, 1
      %p48 = por %p46, %p47
      %p50 = scmp.ne.s32.totalorder %s35, %s49
      %p51 = scmp.eq.s32.totalorder %s18, 0
      %p52 = por %p50, %p51
      %s53 = ssub.s32 %s19, %s31
      %s54 = ssub.s32 %s20, %s27
      %s55 = sor.u32 %s53, %s54
      %p56 = scmp.eq.s32.totalorder %s55, 0
      %s58 = sadd.s32 %s57, 1
      %s59 = scalar_select %p56, %s57, %s58
      %p62 = pneg %p56
      %p63 = scmp.eq.s32.totalorder %s12, 1
      %p64 = por %p62, %p63
      %p65 = scmp.ne.s32.totalorder %s57, %s60
      %p66 = scmp.eq.s32.totalorder %s12, 0
      %p67 = por %p65, %p66
      %p68 = scmp.ne.s32.totalorder %s57, %s60
      %p69 = scmp.eq.s32.totalorder %s17, 1
      %p70 = por %p68, %p69
      %p71 = scmp.ne.s32.totalorder %s60, %s61
      %p72 = scmp.eq.s32.totalorder %s17, 0
      %p73 = por %p71, %p72
      %p74 = scmp.ne.s32.totalorder %s60, %s61
      %p75 = scmp.eq.s32.totalorder %s18, 1
      %p76 = por %p74, %p75
      %p78 = scmp.ne.s32.totalorder %s61, %s77
      %p79 = scmp.eq.s32.totalorder %s18, 0
      %p80 = por %p78, %p79
      %s81 = sadd.s32 %s20, 1
      %s82 = sadd.s32 %s27, 1
      %s83 = ssub.s32 %s19, %s31
      %s84 = ssub.s32 %s81, %s82
      %s85 = sor.u32 %s83, %s84
      %p86 = scmp.eq.s32.totalorder %s85, 0
      %s88 = sadd.s32 %s87, 1
      %s89 = scalar_select %p86, %s87, %s88
      %p92 = pneg %p86
      %p93 = scmp.eq.s32.totalorder %s12, 1
      %p94 = por %p92, %p93
      %p95 = scmp.ne.s32.totalorder %s87, %s90
      %p96 = scmp.eq.s32.totalorder %s12, 0
      %p97 = por %p95, %p96
      %p98 = scmp.ne.s32.totalorder %s87, %s90
      %p99 = scmp.eq.s32.totalorder %s17, 1
      %p100 = por %p98, %p99
      %p101 = scmp.ne.s32.totalorder %s90, %s91
      %p102 = scmp.eq.s32.totalorder %s17, 0
      %p103 = por %p101, %p102
      %p104 = scmp.ne.s32.totalorder %s90, %s91
      %p105 = scmp.eq.s32.totalorder %s18, 1
      %p106 = por %p104, %p105
      %p108 = scmp.ne.s32.totalorder %s91, %s107
      %p109 = scmp.eq.s32.totalorder %s18, 0
      %p110 = por %p108, %p109
      %s111 = ssub.s32 %s19, %s31
      %s112 = ssub.s32 %s20, %s27
      %s113 = sor.u32 %s111, %s112
      %p114 = scmp.eq.s32.totalorder %s113, 0
      %s116 = sadd.s32 %s115, 1
      %s117 = scalar_select %p114, %s115, %s116
      %p120 = pneg %p114
      %p121 = scmp.eq.s32.totalorder %s12, 1
      %p122 = por %p120, %p121
      %p123 = scmp.ne.s32.totalorder %s115, %s118
      %p124 = scmp.eq.s32.totalorder %s12, 0
      %p125 = por %p123, %p124
      %p126 = scmp.ne.s32.totalorder %s115, %s118
      %p127 = scmp.eq.s32.totalorder %s17, 1
      %p128 = por %p126, %p127
      %p129 = scmp.ne.s32.totalorder %s118, %s119
      %p130 = scmp.eq.s32.totalorder %s17, 0
      %p131 = por %p129, %p130
      %p132 = scmp.ne.s32.totalorder %s118, %s119
      %p133 = scmp.eq.s32.totalorder %s18, 1
      %p134 = por %p132, %p133
      %p136 = scmp.ne.s32.totalorder %s119, %s135
      %p137 = scmp.eq.s32.totalorder %s18, 0
      %p138 = por %p136, %p137
      %p139 = scmp.le.s32.totalorder 1, %s12
      %p140 = scmp.lt.s32.totalorder %s12, 3
      %p141 = pnand %p139, %p140
      %p142 = pneg %p141
      // Predicated region
      $region9: #{tpu_custom_call.1} parent=5 // pred_check
        _
      $region10: #{tpu_custom_call.1} parent=5 // pred_check_branch
        %144 = sbr.rel (%p141) target = $region12
      $region11: #{tpu_custom_call.1} parent=5 // pred_region
        %s145 = ssub.s32 %s12, 1
        // Predicated region
        $region13: #{tpu_custom_call.1} parent=11 // pred_check
          %p146 = pneg %p45
        $region14: #{tpu_custom_call.1} parent=11 // pred_check_branch
          %148 = sbr.rel (%p146) target = $region16
        $region15: #{tpu_custom_call.1} parent=11 // pred_region
          _
        $region16: #{tpu_custom_call.1} parent=11 // pred_fallthru
          _
      $region12: #{tpu_custom_call.1} parent=5 // pred_fallthru
        _
      %p149 = scmp.lt.s32.totalorder %s12, 2
      // Predicated region
      $region17: #{tpu_custom_call.1} parent=5 // pred_check
        %p150 = pneg %p149
      $region18: #{tpu_custom_call.1} parent=5 // pred_check_branch
        %152 = sbr.rel (%p150) target = $region20
      $region19: #{tpu_custom_call.1} parent=5 // pred_region
        // Predicated region
        $region21: #{tpu_custom_call.1} parent=19 // pred_check
          %p153 = pneg %p67
        $region22: #{tpu_custom_call.1} parent=19 // pred_check_branch
          %155 = sbr.rel (%p153) target = $region24
        $region23: #{tpu_custom_call.1} parent=19 // pred_region
          %p156 = scmp.lt.s32.totalorder %s19, 1
          %s157 = scalar_select %p156, %s19, 1
          %p158 = scmp.lt.s32.totalorder %s20, 1
          %s159 = scalar_select %p158, %s20, 1
          %s160 = smul.addr %s157, 2
          %s161 = sadd.s32 %s159, %s160
          %s162 = smul.addr %s161, 4
          %s163 = scalar_lea.vmem %s1, %s162
        $region24: #{tpu_custom_call.1} parent=19 // pred_fallthru
          _
        // Predicated region
        $region25: #{tpu_custom_call.1} parent=19 // pred_check
          %p164 = pneg %p97
        $region26: #{tpu_custom_call.1} parent=19 // pred_check_branch
          %166 = sbr.rel (%p164) target = $region28
        $region27: #{tpu_custom_call.1} parent=19 // pred_region
          %s167 = sadd.s32 %s20, 1
          %p168 = scmp.lt.s32.totalorder %s19, 1
          %s169 = scalar_select %p168, %s19, 1
          %p170 = scmp.lt.s32.totalorder %s167, 1
          %s171 = scalar_select %p170, %s167, 1
          %s172 = smul.addr %s169, 2
          %s173 = sadd.s32 %s171, %s172
          %s174 = smul.addr %s173, 4
          %s175 = scalar_lea.vmem %s2, %s174
          %s176 = sadd.s32 %s20, 1
        $region28: #{tpu_custom_call.1} parent=19 // pred_fallthru
          _
      $region20: #{tpu_custom_call.1} parent=5 // pred_fallthru
        _
      %p177 = scmp.le.s32.totalorder 1, %s12
      %p178 = scmp.lt.s32.totalorder %s12, 3
      %p179 = pnand %p177, %p178
      %p180 = pneg %p179
      // Predicated region
      $region29: #{tpu_custom_call.1} parent=5 // pred_check
        _
      $region30: #{tpu_custom_call.1} parent=5 // pred_check_branch
        %182 = sbr.rel (%p179) target = $region32
      $region31: #{tpu_custom_call.1} parent=5 // pred_region
        %s183 = ssub.s32 %s12, 1
        %p184 = pneg %p45
        %p185 = pneg %p42
        %p186 = scmp.lt.s32.totalorder %s21, 1
        %s187 = scalar_select %p186, %s21, 1
        %p188 = scmp.lt.s32.totalorder %s22, 1
        %s189 = scalar_select %p188, %s22, 1
        %s190 = smul.addr %s187, 2
        %s191 = sadd.s32 %s189, %s190
        %s192 = smul.addr %s191, 4
        %s193 = scalar_lea.vmem %s1, %s192
        %p194 = pneg %p73
        %p195 = pneg %p70
        %s196 = sadd.s32 %s22, 1
        %p197 = scmp.lt.s32.totalorder %s21, 1
        %s198 = scalar_select %p197, %s21, 1
        %p199 = scmp.lt.s32.totalorder %s196, 1
        %s200 = scalar_select %p199, %s196, 1
        %s201 = smul.addr %s198, 2
        %s202 = sadd.s32 %s200, %s201
        %s203 = smul.addr %s202, 4
        %s204 = scalar_lea.vmem %s2, %s203
        %p205 = pneg %p103
        %p206 = pneg %p100
        %p207 = pneg %p131
        %p208 = pneg %p128
        %s209 = sand.u32 %s118, 1
        %s210 = scalar_lea.sflag [#allocation3], %s209
        %s211 = sand.u32 %s118, 1
        %s212 = smul.addr %s211, 16
        %s213 = scalar_lea.vmem [#allocation2], %s212
        %p214 = scmp.lt.s32.totalorder %s21, 1
        %s215 = scalar_select %p214, %s21, 1
        %p216 = scmp.lt.s32.totalorder %s22, 1
        %s217 = scalar_select %p216, %s22, 1
        %s218 = smul.addr %s215, 2
        %s219 = sadd.s32 %s217, %s218
        %s220 = smul.addr %s219, 4
        %s221 = scalar_lea.vmem %s1, %s220
        %s222 = sadd.s32 %s22, 1
        %p223 = scmp.lt.s32.totalorder %s21, 1
        %s224 = scalar_select %p223, %s21, 1
        %p225 = scmp.lt.s32.totalorder %s222, 1
        %s226 = scalar_select %p225, %s222, 1
        %s227 = smul.addr %s224, 2
        %s228 = sadd.s32 %s226, %s227
        %s229 = smul.addr %s228, 4
        %s230 = scalar_lea.vmem %s2, %s229
        %s231 = sadd.s32 %s22, 1
        %v232 = vld [vmem:[%s221] sm:$0xf]
        %v233 = vld [vmem:[%s0] sm:$0xff]
        %v234 = vld [vmem:[%s0 + $0x8] sm:$0xff]
        %vm235 = vcmask 31744
        %v237 = vsel %vm235, %v233, 0
        %v240 = vsel %vm235, %v234, 0
        %vm242 = vcmask 1043456
        %v244 = vsel %vm242, %v232, 0
        %246 = vmatprep.subr.mxu0 0.0
        %247 = vmatpush1.msra.mxu0 %v244
        %248 = vmatprep.subr.mxu0 0.0
        %249 = vmatpush1.msra.mxu0 0.0
        %250 = vmatprep.subr.mxu0 0.0
        %251 = vmatpush1.msra.mxu0 0.0
        %252 = vmatprep.subr.mxu0 0.0
        %253 = vmatpush1.msra.mxu0 0.0
        %254 = vmatprep.subr.mxu0 0.0
        %255 = vmatpush1.msra.mxu0 0.0
        %256 = vmatprep.subr.mxu0 0.0
        %257 = vmatpush1.msra.mxu0 0.0
        %258 = vmatprep.subr.mxu0 0.0
        %259 = vmatpush1.msra.mxu0 0.0
        %260 = vmatprep.subr.mxu0 0.0
        %261 = vmatpush1.msra.mxu0 0.0
        %262 = vmatprep.subr.mxu0 0.0
        %263 = vmatpush1.msra.mxu0 0.0
        %264 = vmatprep.subr.mxu0 0.0
        %265 = vmatpush1.msra.mxu0 0.0
        %266 = vmatprep.subr.mxu0 0.0
        %267 = vmatpush1.msra.mxu0 0.0
        %268 = vmatprep.subr.mxu0 0.0
        %269 = vmatpush1.msra.mxu0 0.0
        %270 = vmatprep.subr.mxu0 0.0
        %271 = vmatpush1.msra.mxu0 0.0
        %272 = vmatprep.subr.mxu0 0.0
        %273 = vmatpush1.msra.mxu0 0.0
        %274 = vmatprep.subr.mxu0 0.0
        %275 = vmatpush1.msra.mxu0 0.0
        %276 = vmatprep.subr.mxu0 0.0
        %277 = vmatpush1.msra.mxu0 0.0
        %278 = vmatprep.subr.mxu0 0.0
        %279 = vmatpush1.msra.mxu0 0.0
        %280 = vmatprep.subr.mxu0 0.0
        %281 = vmatpush1.msra.mxu0 0.0
        %282 = vmatprep.subr.mxu0 0.0
        %283 = vmatpush1.msra.mxu0 0.0
        %284 = vmatprep.subr.mxu0 0.0
        %285 = vmatpush1.msra.mxu0 0.0
        %286 = vmatprep.subr.mxu0 0.0
        %287 = vmatpush1.msra.mxu0 0.0
        %288 = vmatprep.subr.mxu0 0.0
        %289 = vmatpush1.msra.mxu0 0.0
        %290 = vmatprep.subr.mxu0 0.0
        %291 = vmatpush1.msra.mxu0 0.0
        %292 = vmatprep.subr.mxu0 0.0
        %293 = vmatpush1.msra.mxu0 0.0
        %294 = vmatprep.subr.mxu0 0.0
        %295 = vmatpush1.msra.mxu0 0.0
        %296 = vmatprep.subr.mxu0 0.0
        %297 = vmatpush1.msra.mxu0 0.0
        %298 = vmatprep.subr.mxu0 0.0
        %299 = vmatpush1.msra.mxu0 0.0
        %300 = vmatprep.subr.mxu0 0.0
        %301 = vmatpush1.msra.mxu0 0.0
        %302 = vmatprep.subr.mxu0 0.0
        %303 = vmatpush1.msra.mxu0 0.0
        %304 = vmatprep.subr.mxu0 0.0
        %305 = vmatpush1.msra.mxu0 0.0
        %306 = vmatprep.subr.mxu0 0.0
        %307 = vmatpush1.msra.mxu0 0.0
        %308 = vmatprep.subr.mxu0 0.0
        %309 = vmatpush1.msra.mxu0 0.0
        %310 = vmatprep.mubr.f32.mxu0 0.0
        %311 = vmatmul.mubr.f32.gmra.mrb[0].mxu0 %v237
        %v312 = vpop.f32.mrb[0].mxu0
        %v313 = vadd.f32 0.0, %v312
        %v314 = vpop.f32.mrb[0].mxu0
        %315 = vmatprep.mubr.f32.mxu0 0.0
        %316 = vmatmul.mubr.f32.gmra.mrb[0].mxu0 %v240
        %v317 = vpop.f32.mrb[0].mxu0
        %v318 = vadd.f32 0.0, %v317
        %v319 = vpop.f32.mrb[0].mxu0
        %320 = vdwg.mxu0
        %321 = vst [vmem:[%s213] sm:$0xff] %v313
        %322 = vst [vmem:[%s213 + $0x8] sm:$0xff] %v318
        %v323 = vld [vmem:[%s230] sm:$0xf]
        %324 = vrot.lane.b32.xlu0 %v232, 127
        %v325 = vpop.permute.xlu0 %324
        %328 = vrot.lane.b32.xlu0 %v323, 127
        %v329 = vpop.permute.xlu0 %328
        %vm331 = vcmask 1039360
        %v332 = vsel %vm331, %v325, %v329
        %v333 = vld [vmem:[%s213] sm:$0xff]
        %v334 = vld [vmem:[%s213 + $0x8] sm:$0xff]
        %s335 = scalar_lea.vmem %s0, 16
        %v336 = vld [vmem:[%s335] sm:$0xff]
        %v337 = vld [vmem:[%s335 + $0x8] sm:$0xff]
        %v339 = vsel %vm235, %v336, 0
        %v342 = vsel %vm235, %v337, 0
        %v345 = vsel %vm242, %v332, 0
        %347 = vmatprep.subr.mxu0 0.0
        %348 = vmatpush1.msra.mxu0 %v345
        %349 = vmatprep.subr.mxu0 0.0
        %350 = vmatpush1.msra.mxu0 0.0
        %351 = vmatprep.subr.mxu0 0.0
        %352 = vmatpush1.msra.mxu0 0.0
        %353 = vmatprep.subr.mxu0 0.0
        %354 = vmatpush1.msra.mxu0 0.0
        %355 = vmatprep.subr.mxu0 0.0
        %356 = vmatpush1.msra.mxu0 0.0
        %357 = vmatprep.subr.mxu0 0.0
        %358 = vmatpush1.msra.mxu0 0.0
        %359 = vmatprep.subr.mxu0 0.0
        %360 = vmatpush1.msra.mxu0 0.0
        %361 = vmatprep.subr.mxu0 0.0
        %362 = vmatpush1.msra.mxu0 0.0
        %363 = vmatprep.subr.mxu0 0.0
        %364 = vmatpush1.msra.mxu0 0.0
        %365 = vmatprep.subr.mxu0 0.0
        %366 = vmatpush1.msra.mxu0 0.0
        %367 = vmatprep.subr.mxu0 0.0
        %368 = vmatpush1.msra.mxu0 0.0
        %369 = vmatprep.subr.mxu0 0.0
        %370 = vmatpush1.msra.mxu0 0.0
        %371 = vmatprep.subr.mxu0 0.0
        %372 = vmatpush1.msra.mxu0 0.0
        %373 = vmatprep.subr.mxu0 0.0
        %374 = vmatpush1.msra.mxu0 0.0
        %375 = vmatprep.subr.mxu0 0.0
        %376 = vmatpush1.msra.mxu0 0.0
        %377 = vmatprep.subr.mxu0 0.0
        %378 = vmatpush1.msra.mxu0 0.0
        %379 = vmatprep.subr.mxu0 0.0
        %380 = vmatpush1.msra.mxu0 0.0
        %381 = vmatprep.subr.mxu0 0.0
        %382 = vmatpush1.msra.mxu0 0.0
        %383 = vmatprep.subr.mxu0 0.0
        %384 = vmatpush1.msra.mxu0 0.0
        %385 = vmatprep.subr.mxu0 0.0
        %386 = vmatpush1.msra.mxu0 0.0
        %387 = vmatprep.subr.mxu0 0.0
        %388 = vmatpush1.msra.mxu0 0.0
        %389 = vmatprep.subr.mxu0 0.0
        %390 = vmatpush1.msra.mxu0 0.0
        %391 = vmatprep.subr.mxu0 0.0
        %392 = vmatpush1.msra.mxu0 0.0
        %393 = vmatprep.subr.mxu0 0.0
        %394 = vmatpush1.msra.mxu0 0.0
        %395 = vmatprep.subr.mxu0 0.0
        %396 = vmatpush1.msra.mxu0 0.0
        %397 = vmatprep.subr.mxu0 0.0
        %398 = vmatpush1.msra.mxu0 0.0
        %399 = vmatprep.subr.mxu0 0.0
        %400 = vmatpush1.msra.mxu0 0.0
        %401 = vmatprep.subr.mxu0 0.0
        %402 = vmatpush1.msra.mxu0 0.0
        %403 = vmatprep.subr.mxu0 0.0
        %404 = vmatpush1.msra.mxu0 0.0
        %405 = vmatprep.subr.mxu0 0.0
        %406 = vmatpush1.msra.mxu0 0.0
        %407 = vmatprep.subr.mxu0 0.0
        %408 = vmatpush1.msra.mxu0 0.0
        %409 = vmatprep.subr.mxu0 0.0
        %410 = vmatpush1.msra.mxu0 0.0
        %411 = vmatprep.mubr.f32.mxu0 0.0
        %412 = vmatmul.mubr.f32.gmra.mrb[0].mxu0 %v339
        %v413 = vpop.f32.mrb[0].mxu0
        %v414 = vadd.f32 0.0, %v413
        %v415 = vpop.f32.mrb[0].mxu0
        %416 = vmatprep.mubr.f32.mxu0 0.0
        %417 = vmatmul.mubr.f32.gmra.mrb[0].mxu0 %v342
        %v418 = vpop.f32.mrb[0].mxu0
        %v419 = vadd.f32 0.0, %v418
        %v420 = vpop.f32.mrb[0].mxu0
        %421 = vdwg.mxu0
        %v422 = vadd.f32 %v333, %v414
        %v423 = vadd.f32 %v334, %v419
        %424 = vst [vmem:[%s213] sm:$0xff] %v422
        %425 = vst [vmem:[%s213 + $0x8] sm:$0xff] %v423
        %426 = vrot.lane.b32.xlu0 %v232, 126
        %v427 = vpop.permute.xlu0 %426
        %429 = vrot.lane.b32.xlu0 %v323, 126
        %v430 = vpop.permute.xlu0 %429
        %vm432 = vcmask 1031168
        %v433 = vsel %vm432, %v427, %v430
        %v434 = vld [vmem:[%s213] sm:$0xff]
        %v435 = vld [vmem:[%s213 + $0x8] sm:$0xff]
        %s436 = scalar_lea.vmem %s0, 32
        %v437 = vld [vmem:[%s436] sm:$0xff]
        %v438 = vld [vmem:[%s436 + $0x8] sm:$0xff]
        %v440 = vsel %vm235, %v437, 0
        %v443 = vsel %vm235, %v438, 0
        %v446 = vsel %vm242, %v433, 0
        %448 = vmatprep.subr.mxu0 0.0
        %449 = vmatpush1.msra.mxu0 %v446
        %450 = vmatprep.subr.mxu0 0.0
        %451 = vmatpush1.msra.mxu0 0.0
        %452 = vmatprep.subr.mxu0 0.0
        %453 = vmatpush1.msra.mxu0 0.0
        %454 = vmatprep.subr.mxu0 0.0
        %455 = vmatpush1.msra.mxu0 0.0
        %456 = vmatprep.subr.mxu0 0.0
        %457 = vmatpush1.msra.mxu0 0.0
        %458 = vmatprep.subr.mxu0 0.0
        %459 = vmatpush1.msra.mxu0 0.0
        %460 = vmatprep.subr.mxu0 0.0
        %461 = vmatpush1.msra.mxu0 0.0
        %462 = vmatprep.subr.mxu0 0.0
        %463 = vmatpush1.msra.mxu0 0.0
        %464 = vmatprep.subr.mxu0 0.0
        %465 = vmatpush1.msra.mxu0 0.0
        %466 = vmatprep.subr.mxu0 0.0
        %467 = vmatpush1.msra.mxu0 0.0
        %468 = vmatprep.subr.mxu0 0.0
        %469 = vmatpush1.msra.mxu0 0.0
        %470 = vmatprep.subr.mxu0 0.0
        %471 = vmatpush1.msra.mxu0 0.0
        %472 = vmatprep.subr.mxu0 0.0
        %473 = vmatpush1.msra.mxu0 0.0
        %474 = vmatprep.subr.mxu0 0.0
        %475 = vmatpush1.msra.mxu0 0.0
        %476 = vmatprep.subr.mxu0 0.0
        %477 = vmatpush1.msra.mxu0 0.0
        %478 = vmatprep.subr.mxu0 0.0
        %479 = vmatpush1.msra.mxu0 0.0
        %480 = vmatprep.subr.mxu0 0.0
        %481 = vmatpush1.msra.mxu0 0.0
        %482 = vmatprep.subr.mxu0 0.0
        %483 = vmatpush1.msra.mxu0 0.0
        %484 = vmatprep.subr.mxu0 0.0
        %485 = vmatpush1.msra.mxu0 0.0
        %486 = vmatprep.subr.mxu0 0.0
        %487 = vmatpush1.msra.mxu0 0.0
        %488 = vmatprep.subr.mxu0 0.0
        %489 = vmatpush1.msra.mxu0 0.0
        %490 = vmatprep.subr.mxu0 0.0
        %491 = vmatpush1.msra.mxu0 0.0
        %492 = vmatprep.subr.mxu0 0.0
        %493 = vmatpush1.msra.mxu0 0.0
        %494 = vmatprep.subr.mxu0 0.0
        %495 = vmatpush1.msra.mxu0 0.0
        %496 = vmatprep.subr.mxu0 0.0
        %497 = vmatpush1.msra.mxu0 0.0
        %498 = vmatprep.subr.mxu0 0.0
        %499 = vmatpush1.msra.mxu0 0.0
        %500 = vmatprep.subr.mxu0 0.0
        %501 = vmatpush1.msra.mxu0 0.0
        %502 = vmatprep.subr.mxu0 0.0
        %503 = vmatpush1.msra.mxu0 0.0
        %504 = vmatprep.subr.mxu0 0.0
        %505 = vmatpush1.msra.mxu0 0.0
        %506 = vmatprep.subr.mxu0 0.0
        %507 = vmatpush1.msra.mxu0 0.0
        %508 = vmatprep.subr.mxu0 0.0
        %509 = vmatpush1.msra.mxu0 0.0
        %510 = vmatprep.subr.mxu0 0.0
        %511 = vmatpush1.msra.mxu0 0.0
        %512 = vmatprep.mubr.f32.mxu0 0.0
        %513 = vmatmul.mubr.f32.gmra.mrb[0].mxu0 %v440
        %v514 = vpop.f32.mrb[0].mxu0
        %v515 = vadd.f32 0.0, %v514
        %v516 = vpop.f32.mrb[0].mxu0
        %517 = vmatprep.mubr.f32.mxu0 0.0
        %518 = vmatmul.mubr.f32.gmra.mrb[0].mxu0 %v443
        %v519 = vpop.f32.mrb[0].mxu0
        %v520 = vadd.f32 0.0, %v519
        %v521 = vpop.f32.mrb[0].mxu0
        %522 = vdwg.mxu0
        %v523 = vadd.f32 %v434, %v515
        %v524 = vadd.f32 %v435, %v520
        %525 = vst [vmem:[%s213] sm:$0xff] %v523
        %526 = vst [vmem:[%s213 + $0x8] sm:$0xff] %v524
        %527 = vrot.lane.b32.xlu0 %v232, 125
        %v528 = vpop.permute.xlu0 %527
        %530 = vrot.lane.b32.xlu0 %v323, 125
        %v531 = vpop.permute.xlu0 %530
        %vm533 = vcmask 1022976
        %v534 = vsel %vm533, %v528, %v531
        %v535 = vld [vmem:[%s213] sm:$0xff]
        %v536 = vld [vmem:[%s213 + $0x8] sm:$0xff]
        %s537 = scalar_lea.vmem %s0, 48
        %v538 = vld [vmem:[%s537] sm:$0xff]
        %v539 = vld [vmem:[%s537 + $0x8] sm:$0xff]
        %v541 = vsel %vm235, %v538, 0
        %v544 = vsel %vm235, %v539, 0
        %v547 = vsel %vm242, %v534, 0
        %549 = vmatprep.subr.mxu0 0.0
        %550 = vmatpush1.msra.mxu0 %v547
        %551 = vmatprep.subr.mxu0 0.0
        %552 = vmatpush1.msra.mxu0 0.0
        %553 = vmatprep.subr.mxu0 0.0
        %554 = vmatpush1.msra.mxu0 0.0
        %555 = vmatprep.subr.mxu0 0.0
        %556 = vmatpush1.msra.mxu0 0.0
        %557 = vmatprep.subr.mxu0 0.0
        %558 = vmatpush1.msra.mxu0 0.0
        %559 = vmatprep.subr.mxu0 0.0
        %560 = vmatpush1.msra.mxu0 0.0
        %561 = vmatprep.subr.mxu0 0.0
        %562 = vmatpush1.msra.mxu0 0.0
        %563 = vmatprep.subr.mxu0 0.0
        %564 = vmatpush1.msra.mxu0 0.0
        %565 = vmatprep.subr.mxu0 0.0
        %566 = vmatpush1.msra.mxu0 0.0
        %567 = vmatprep.subr.mxu0 0.0
        %568 = vmatpush1.msra.mxu0 0.0
        %569 = vmatprep.subr.mxu0 0.0
        %570 = vmatpush1.msra.mxu0 0.0
        %571 = vmatprep.subr.mxu0 0.0
        %572 = vmatpush1.msra.mxu0 0.0
        %573 = vmatprep.subr.mxu0 0.0
        %574 = vmatpush1.msra.mxu0 0.0
        %575 = vmatprep.subr.mxu0 0.0
        %576 = vmatpush1.msra.mxu0 0.0
        %577 = vmatprep.subr.mxu0 0.0
        %578 = vmatpush1.msra.mxu0 0.0
        %579 = vmatprep.subr.mxu0 0.0
        %580 = vmatpush1.msra.mxu0 0.0
        %581 = vmatprep.subr.mxu0 0.0
        %582 = vmatpush1.msra.mxu0 0.0
        %583 = vmatprep.subr.mxu0 0.0
        %584 = vmatpush1.msra.mxu0 0.0
        %585 = vmatprep.subr.mxu0 0.0
        %586 = vmatpush1.msra.mxu0 0.0
        %587 = vmatprep.subr.mxu0 0.0
        %588 = vmatpush1.msra.mxu0 0.0
        %589 = vmatprep.subr.mxu0 0.0
        %590 = vmatpush1.msra.mxu0 0.0
        %591 = vmatprep.subr.mxu0 0.0
        %592 = vmatpush1.msra.mxu0 0.0
        %593 = vmatprep.subr.mxu0 0.0
        %594 = vmatpush1.msra.mxu0 0.0
        %595 = vmatprep.subr.mxu0 0.0
        %596 = vmatpush1.msra.mxu0 0.0
        %597 = vmatprep.subr.mxu0 0.0
        %598 = vmatpush1.msra.mxu0 0.0
        %599 = vmatprep.subr.mxu0 0.0
        %600 = vmatpush1.msra.mxu0 0.0
        %601 = vmatprep.subr.mxu0 0.0
        %602 = vmatpush1.msra.mxu0 0.0
        %603 = vmatprep.subr.mxu0 0.0
        %604 = vmatpush1.msra.mxu0 0.0
        %605 = vmatprep.subr.mxu0 0.0
        %606 = vmatpush1.msra.mxu0 0.0
        %607 = vmatprep.subr.mxu0 0.0
        %608 = vmatpush1.msra.mxu0 0.0
        %609 = vmatprep.subr.mxu0 0.0
        %610 = vmatpush1.msra.mxu0 0.0
        %611 = vmatprep.subr.mxu0 0.0
        %612 = vmatpush1.msra.mxu0 0.0
        %613 = vmatprep.mubr.f32.mxu0 0.0
        %614 = vmatmul.mubr.f32.gmra.mrb[0].mxu0 %v541
        %v615 = vpop.f32.mrb[0].mxu0
        %v616 = vadd.f32 0.0, %v615
        %v617 = vpop.f32.mrb[0].mxu0
        %618 = vmatprep.mubr.f32.mxu0 0.0
        %619 = vmatmul.mubr.f32.gmra.mrb[0].mxu0 %v544
        %v620 = vpop.f32.mrb[0].mxu0
        %v621 = vadd.f32 0.0, %v620
        %v622 = vpop.f32.mrb[0].mxu0
        %623 = vdwg.mxu0
        %v624 = vadd.f32 %v535, %v616
        %v625 = vadd.f32 %v536, %v621
        %626 = vst [vmem:[%s213] sm:$0xff] %v624
        %627 = vst [vmem:[%s213 + $0x8] sm:$0xff] %v625
        %s628 = sand.u32 %s118, 1
        %s629 = scalar_lea.sflag [#allocation3], %s628
        %s630 = sand.u32 %s118, 1
        %s631 = smul.addr %s630, 16
        %s632 = scalar_lea.vmem [#allocation2], %s631
        // Predicated region
        $region33: #{tpu_custom_call.1} parent=31 // pred_check
          %p633 = pneg %p128
        $region34: #{tpu_custom_call.1} parent=31 // pred_check_branch
          %635 = sbr.rel (%p633) target = $region36
        $region35: #{tpu_custom_call.1} parent=31 // pred_region
          %s637 = ssub.s32 256, 256
          %638 = vsyncadd %s629, %s637
          %s639 = smul.addr %s21, 2
          %s640 = sadd.s32 %s22, %s639
          %s641 = smul.addr %s640, 128
          %s642 = scalar_lea.hbm %s3, %s641
          %s643 = sshll.u32 %s632, 4
          %s644 = int_to_ptr.vmem [resolvable:$true] %s643
          %649 = dma.vmem_to_hbm [thread:$0]  %s644, 256, %s642, %s629, 128, 128, 8
        $region36: #{tpu_custom_call.1} parent=31 // pred_fallthru
          _
      $region32: #{tpu_custom_call.1} parent=5 // pred_fallthru
        _
      %p650 = scmp.le.s32.totalorder 2, %s12
      // Predicated region
      $region37: #{tpu_custom_call.1} parent=5 // pred_check
        %p651 = pneg %p650
      $region38: #{tpu_custom_call.1} parent=5 // pred_check_branch
        %653 = sbr.rel (%p651) target = $region40
      $region39: #{tpu_custom_call.1} parent=5 // pred_region
        %s654 = ssub.s32 %s12, 2
        // Predicated region
        $region41: #{tpu_custom_call.1} parent=39 // pred_check
          %p655 = pneg %p134
        $region42: #{tpu_custom_call.1} parent=39 // pred_check_branch
          %657 = sbr.rel (%p655) target = $region44
        $region43: #{tpu_custom_call.1} parent=39 // pred_region
          %s658 = sand.u32 %s119, 1
          %s659 = scalar_lea.sflag [#allocation3], %s658
          %s660 = sand.u32 %s119, 1
          %s661 = smul.addr %s660, 16
          %s662 = scalar_lea.vmem [#allocation2], %s661
          %663 = dma.done %s659, 256
        $region44: #{tpu_custom_call.1} parent=39 // pred_fallthru
          _
      $region40: #{tpu_custom_call.1} parent=5 // pred_fallthru
        _
    $region6: #{tpu_custom_call.1} parent=1 // loop_footer
      %s16 = sadd.s32 1, %s12
    $region7: #{tpu_custom_call.1} parent=1 // loop_footer_branch
      %11 = sbr.rel target = $region3
    $region8: #{tpu_custom_call.1} parent=1 // loop_exit
      _
    %664 = vsyncpa [#allocation3], 1
    %s665 = scalar_lea.sflag [#allocation3], 1
    %666 = vsyncpa %s665, 1

</llo_original>
